<compile_context>
chip_gen: v7x
topology: tpu7x:2x2x1
jax: 0.10.0
libtpu: 0.0.40
codegen_flags: <defaults>
</compile_context>

<pallas_src>
import functools

import jax
import jax.numpy as jnp
from jax import lax
from jax.experimental import pallas as pl
from jax.experimental.pallas import tpu as pltpu


LANE = 128  # TPU lane width  — pad minor dims to this.
SUB = 8     # TPU sublane width — pad the output's row dim to this.


def _round_up(x, m):
    return ((x + m - 1) // m) * m


def _pad2d(x, rows, cols):
    r, c = x.shape
    return jnp.pad(x, ((0, rows - r), (0, cols - c)))


def _default_recur_dtype():
    """bf16 elementwise recurrence on v6e/v7x (bf16 VPU/EUP); f32 on <= v5e."""
    try:
        kind = jax.devices()[0].device_kind.lower()
    except Exception:
        return jnp.float32
    for old in ("v2", "v3", "v4", "v5"):
        if old in kind:
            return jnp.float32
    return jnp.bfloat16


# ---------------------------------------------------------------------------
# Pallas kernel: fused (gather + input-proj + hidden-bias) matmul, unrolled
# recurrence, final projection.  Single invocation, everything VMEM-resident.
# ---------------------------------------------------------------------------
def rnn_lm_kernel(onehot_ref, emb_proj_ref, whh_ref, wout_ref, bout_ref, o_ref,
                  *, recur_dtype):
    # onehot_ref   : [seq*BP, NCP] bf16  time-major one-hot tokens
    #                (padded batch rows are all-zero)
    # emb_proj_ref : [NCP, HP]     bf16  (C @ W_ih + b_h), zero-padded
    # whh_ref      : [HP, HP]      bf16
    # wout_ref     : [HP, NCP]     bf16
    # bout_ref     : [1, NCP]      f32   (self.b; W has bias=False)
    # o_ref        : [BP, NCP]     f32   padded logits (wrapper slices)
    bp = o_ref.shape[0]
    seq = onehot_ref.shape[0] // bp

    # Embedding gather + input projection + b_ih + b_hh, all folded into one
    # bf16 MXU matmul (exact selection: one-hot rows are 0/1).
    pre_all = jnp.dot(onehot_ref[...], emb_proj_ref[...],
                      preferred_element_type=jnp.float32).astype(recur_dtype)

    w_hh = whh_ref[...]                                         # bf16 [HP, HP]

    # Recurrence, statically unrolled (seq is a small compile-time constant).
    # Step 0 peeled: h0 == 0 so h0 @ W_hh is dead.
    h = jnp.tanh(pre_all[0:bp])                                 # [BP, HP]
    for t in range(1, seq):
        rec = jnp.dot(h.astype(jnp.bfloat16), w_hh,
                      preferred_element_type=jnp.float32).astype(recur_dtype)
        h = jnp.tanh(pre_all[t * bp:(t + 1) * bp] + rec)

    # Final projection — full [8, 128k] unmasked lane-dense store.
    o_ref[...] = (jnp.dot(h.astype(jnp.bfloat16), wout_ref[...],
                          preferred_element_type=jnp.float32)
                  + bout_ref[...])


# ---------------------------------------------------------------------------
# One-time parameter preparation (padding / casting / algebraic fold).
# Done ONCE, outside the per-call hot path.
# ---------------------------------------------------------------------------
def prepare_params(params):
    emb = params["emb"].astype(jnp.float32)      # [n_class, emb]
    w_ih = params["w_ih"].astype(jnp.float32)    # [emb, hidden]
    w_hh = params["w_hh"].astype(jnp.float32)    # [hidden, hidden]
    b_h = params["b_h"].astype(jnp.float32)      # [1, hidden]  (b_ih + b_hh)
    w_out = params["w_out"].astype(jnp.float32)  # [hidden, n_class]
    b_out = params["b_out"].astype(jnp.float32)  # [1, n_class]

    n_class = emb.shape[0]
    n_hidden = w_hh.shape[0]
    ncp = _round_up(n_class, LANE)
    hp = _round_up(n_hidden, LANE)

    # Algebraic fold (exact in f32): onehot @ (C @ W_ih + 1*b_h) == C(X)@W_ih + b_h.
    emb_proj = emb @ w_ih + b_h                  # [n_class, hidden] f32

    return {
        "emb_proj": _pad2d(emb_proj, ncp, hp).astype(jnp.bfloat16),
        "whh": _pad2d(w_hh, hp, hp).astype(jnp.bfloat16),
        "wout": _pad2d(w_out, hp, ncp).astype(jnp.bfloat16),
        "bout": _pad2d(b_out, 1, ncp).astype(jnp.float32),
        "n_class": n_class,
        "n_hidden": n_hidden,
        "ncp": ncp,
        "hp": hp,
    }


# ---------------------------------------------------------------------------
# Forward builder: returns a jitted callable tokens -> logits.
# ---------------------------------------------------------------------------
def build_forward(prep, *, batch, seq, recur_dtype=None):
    if recur_dtype is None:
        recur_dtype = _default_recur_dtype()

    n_class = prep["n_class"]
    ncp = prep["ncp"]
    bp = _round_up(max(batch, SUB), SUB)         # output rows padded to sublane

    kernel = functools.partial(rnn_lm_kernel, recur_dtype=recur_dtype)
    vmem = lambda: pl.BlockSpec(memory_space=pltpu.MemorySpace.VMEM)

    # No grid: total padded footprint is well under VMEM on v5e/v6e/v7x.
    # TODO(synk): if hidden/batch scale up, add a batch grid axis with
    # dimension_semantics=("parallel",) so v7x's two TensorCores split it.
    call = pl.pallas_call(
        kernel,
        out_shape=jax.ShapeDtypeStruct((bp, ncp), jnp.float32),
        in_specs=[vmem() for _ in range(5)],
        out_specs=vmem(),
    )

    @jax.jit
    def forward(tokens, emb_proj, whh, wout, bout):
        # Build the time-major bf16 one-hot in the wrapper (tiny, per-call).
        # Padded batch rows get token id -1 -> all-zero rows -> h stays 0.
        # Note: out-of-range ids (>= n_class) also give zero embeddings
        # (nn.Embedding would error); callers must pass valid ids.
        tok = jnp.transpose(tokens.astype(jnp.int32))            # [seq, batch]
        tok = jnp.pad(tok, ((0, 0), (0, bp - batch)), constant_values=-1)
        tok = tok.reshape(seq * bp, 1)
        cls = lax.broadcasted_iota(jnp.int32, (seq * bp, ncp), 1)
        onehot = (tok == cls).astype(jnp.bfloat16)               # [seq*bp, NCP]

        out_p = call(onehot, emb_proj, whh, wout, bout)
        return out_p[:batch, :n_class]

    emb_proj, whh, wout, bout = prep["emb_proj"], prep["whh"], prep["wout"], prep["bout"]
    return lambda tokens: forward(tokens, emb_proj, whh, wout, bout)


# ---------------------------------------------------------------------------
# Pure-JAX f32 reference (mirrors the PyTorch forward exactly).
# ---------------------------------------------------------------------------
def text_rnn_reference(tokens, params):
    x = jnp.take(params["emb"], tokens, axis=0)      # [batch, seq, emb]
    x = jnp.transpose(x, (1, 0, 2))                  # [seq, batch, emb]
    seq, batch, _ = x.shape
    hidden = params["w_hh"].shape[0]

    def step(h, x_t):
        h_new = jnp.tanh(x_t @ params["w_ih"] + h @ params["w_hh"] + params["b_h"])
        return h_new, h_new

    h0 = jnp.zeros((batch, hidden), jnp.float32)
    h_last, _ = lax.scan(step, h0, x)
    return h_last @ params["w_out"] + params["b_out"]


# ---------------------------------------------------------------------------
# Main
# ---------------------------------------------------------------------------
if __name__ == "__main__":
    # Small shapes consistent with the module.
    n_class = 16      # vocab size (embedding rows AND output classes)
    emb_size = 32
    n_hidden = 32
    batch = 2
    seq = 8

    key = jax.random.PRNGKey(0)
    k_emb, k_ih, k_hh, k_bih, k_bhh, k_w, k_tok = jax.random.split(key, 7)

    scale = 1.0 / jnp.sqrt(jnp.float32(n_hidden))
    params = {
        # nn.Embedding: N(0, 1)
        "emb": jax.random.normal(k_emb, (n_class, emb_size), jnp.float32),
        # nn.RNN weights, pre-transposed for row-major matmul inside kernel.
        "w_ih": jax.random.uniform(k_ih, (emb_size, n_hidden), jnp.float32,
                                   -scale, scale),
        "w_hh": jax.random.uniform(k_hh, (n_hidden, n_hidden), jnp.float32,
                                   -scale, scale),
        # b_ih + b_hh combined.
        "b_h": (jax.random.uniform(k_bih, (1, n_hidden), jnp.float32, -scale, scale)
                + jax.random.uniform(k_bhh, (1, n_hidden), jnp.float32, -scale, scale)),
        # nn.Linear(n_hidden, n_class, bias=False), pre-transposed.
        "w_out": jax.random.uniform(k_w, (n_hidden, n_class), jnp.float32,
                                    -scale, scale),
        # self.b = torch.ones([n_class])
        "b_out": jnp.ones((1, n_class), jnp.float32),
    }

    tokens = jax.random.randint(k_tok, (batch, seq), 0, n_class, jnp.int32)

    prep = prepare_params(params)                       # one-time pad/cast/fold
    forward = build_forward(prep, batch=batch, seq=seq)

    out = jax.block_until_ready(forward(tokens))
    ref = jax.block_until_ready(text_rnn_reference(tokens, params))

    assert out.shape == (batch, n_class), out.shape
    # Tolerance accounts for bf16 MXU operands, the bf16 folded emb_proj table,
    # and (on v6e/v7x) the bf16 recurrence math; accumulation stays f32 and
    # seq is only 8, so compounded rounding stays well inside this bound.
    max_err = jnp.max(jnp.abs(out - ref))
    assert jnp.allclose(out, ref, atol=5e-2, rtol=5e-2), f"max abs err {max_err}"
    print("KERNEL_OK")
</pallas_src>

<mosaic_0001>
module attributes {stable_mosaic.version = 11 : i64} {
  func.func @rnn_lm_kernel(%arg0: memref<64x128xbf16, #tpu.memory_space<vmem>>, %arg1: memref<128x128xbf16, #tpu.memory_space<vmem>>, %arg2: memref<128x128xbf16, #tpu.memory_space<vmem>>, %arg3: memref<128x128xbf16, #tpu.memory_space<vmem>>, %arg4: memref<1x128xf32, #tpu.memory_space<vmem>>, %arg5: memref<8x128xf32, #tpu.memory_space<vmem>>) attributes {dimension_semantics = [], scalar_prefetch = 0 : i64, scratch_operands = 0 : i64, tpu.core_type = #tpu.core_type<tc>} {
    %c0 = arith.constant 0 : index
    %c0_0 = arith.constant 0 : index
    %0 = vector.load %arg0[%c0, %c0_0] : memref<64x128xbf16, #tpu.memory_space<vmem>>, vector<64x128xbf16>
    %c0_1 = arith.constant 0 : index
    %c0_2 = arith.constant 0 : index
    %1 = vector.load %arg1[%c0_1, %c0_2] : memref<128x128xbf16, #tpu.memory_space<vmem>>, vector<128x128xbf16>
    %cst = arith.constant dense<0.000000e+00> : vector<64x128xf32>
    %2 = tpu.matmul %0, %1, %cst {dimension_numbers = #tpu.dot_dimension_numbers<[1], [0], [0], [1], [0, 0, 1, 1], [], []>} : vector<64x128xbf16>, vector<128x128xbf16>, vector<64x128xf32> -> vector<64x128xf32>
    %3 = arith.truncf %2 : vector<64x128xf32> to vector<64x128xbf16>
    %c0_3 = arith.constant 0 : index
    %c0_4 = arith.constant 0 : index
    %4 = vector.load %arg2[%c0_3, %c0_4] : memref<128x128xbf16, #tpu.memory_space<vmem>>, vector<128x128xbf16>
    %5 = vector.extract_strided_slice %3 {offsets = [0, 0], sizes = [8, 128], strides = [1, 1]} : vector<64x128xbf16> to vector<8x128xbf16>
    %6 = math.tanh %5 : vector<8x128xbf16>
    %cst_5 = arith.constant dense<0.000000e+00> : vector<8x128xf32>
    %7 = tpu.matmul %6, %4, %cst_5 {dimension_numbers = #tpu.dot_dimension_numbers<[1], [0], [0], [1], [0, 0, 1, 1], [], []>} : vector<8x128xbf16>, vector<128x128xbf16>, vector<8x128xf32> -> vector<8x128xf32>
    %8 = arith.truncf %7 : vector<8x128xf32> to vector<8x128xbf16>
    %9 = vector.extract_strided_slice %3 {offsets = [8, 0], sizes = [8, 128], strides = [1, 1]} : vector<64x128xbf16> to vector<8x128xbf16>
    %10 = arith.addf %9, %8 : vector<8x128xbf16>
    %11 = math.tanh %10 : vector<8x128xbf16>
    %cst_6 = arith.constant dense<0.000000e+00> : vector<8x128xf32>
    %12 = tpu.matmul %11, %4, %cst_6 {dimension_numbers = #tpu.dot_dimension_numbers<[1], [0], [0], [1], [0, 0, 1, 1], [], []>} : vector<8x128xbf16>, vector<128x128xbf16>, vector<8x128xf32> -> vector<8x128xf32>
    %13 = arith.truncf %12 : vector<8x128xf32> to vector<8x128xbf16>
    %14 = vector.extract_strided_slice %3 {offsets = [16, 0], sizes = [8, 128], strides = [1, 1]} : vector<64x128xbf16> to vector<8x128xbf16>
    %15 = arith.addf %14, %13 : vector<8x128xbf16>
    %16 = math.tanh %15 : vector<8x128xbf16>
    %cst_7 = arith.constant dense<0.000000e+00> : vector<8x128xf32>
    %17 = tpu.matmul %16, %4, %cst_7 {dimension_numbers = #tpu.dot_dimension_numbers<[1], [0], [0], [1], [0, 0, 1, 1], [], []>} : vector<8x128xbf16>, vector<128x128xbf16>, vector<8x128xf32> -> vector<8x128xf32>
    %18 = arith.truncf %17 : vector<8x128xf32> to vector<8x128xbf16>
    %19 = vector.extract_strided_slice %3 {offsets = [24, 0], sizes = [8, 128], strides = [1, 1]} : vector<64x128xbf16> to vector<8x128xbf16>
    %20 = arith.addf %19, %18 : vector<8x128xbf16>
    %21 = math.tanh %20 : vector<8x128xbf16>
    %cst_8 = arith.constant dense<0.000000e+00> : vector<8x128xf32>
    %22 = tpu.matmul %21, %4, %cst_8 {dimension_numbers = #tpu.dot_dimension_numbers<[1], [0], [0], [1], [0, 0, 1, 1], [], []>} : vector<8x128xbf16>, vector<128x128xbf16>, vector<8x128xf32> -> vector<8x128xf32>
    %23 = arith.truncf %22 : vector<8x128xf32> to vector<8x128xbf16>
    %24 = vector.extract_strided_slice %3 {offsets = [32, 0], sizes = [8, 128], strides = [1, 1]} : vector<64x128xbf16> to vector<8x128xbf16>
    %25 = arith.addf %24, %23 : vector<8x128xbf16>
    %26 = math.tanh %25 : vector<8x128xbf16>
    %cst_9 = arith.constant dense<0.000000e+00> : vector<8x128xf32>
    %27 = tpu.matmul %26, %4, %cst_9 {dimension_numbers = #tpu.dot_dimension_numbers<[1], [0], [0], [1], [0, 0, 1, 1], [], []>} : vector<8x128xbf16>, vector<128x128xbf16>, vector<8x128xf32> -> vector<8x128xf32>
    %28 = arith.truncf %27 : vector<8x128xf32> to vector<8x128xbf16>
    %29 = vector.extract_strided_slice %3 {offsets = [40, 0], sizes = [8, 128], strides = [1, 1]} : vector<64x128xbf16> to vector<8x128xbf16>
    %30 = arith.addf %29, %28 : vector<8x128xbf16>
    %31 = math.tanh %30 : vector<8x128xbf16>
    %cst_10 = arith.constant dense<0.000000e+00> : vector<8x128xf32>
    %32 = tpu.matmul %31, %4, %cst_10 {dimension_numbers = #tpu.dot_dimension_numbers<[1], [0], [0], [1], [0, 0, 1, 1], [], []>} : vector<8x128xbf16>, vector<128x128xbf16>, vector<8x128xf32> -> vector<8x128xf32>
    %33 = arith.truncf %32 : vector<8x128xf32> to vector<8x128xbf16>
    %34 = vector.extract_strided_slice %3 {offsets = [48, 0], sizes = [8, 128], strides = [1, 1]} : vector<64x128xbf16> to vector<8x128xbf16>
    %35 = arith.addf %34, %33 : vector<8x128xbf16>
    %36 = math.tanh %35 : vector<8x128xbf16>
    %cst_11 = arith.constant dense<0.000000e+00> : vector<8x128xf32>
    %37 = tpu.matmul %36, %4, %cst_11 {dimension_numbers = #tpu.dot_dimension_numbers<[1], [0], [0], [1], [0, 0, 1, 1], [], []>} : vector<8x128xbf16>, vector<128x128xbf16>, vector<8x128xf32> -> vector<8x128xf32>
    %38 = arith.truncf %37 : vector<8x128xf32> to vector<8x128xbf16>
    %39 = vector.extract_strided_slice %3 {offsets = [56, 0], sizes = [8, 128], strides = [1, 1]} : vector<64x128xbf16> to vector<8x128xbf16>
    %40 = arith.addf %39, %38 : vector<8x128xbf16>
    %41 = math.tanh %40 : vector<8x128xbf16>
    %c0_12 = arith.constant 0 : index
    %c0_13 = arith.constant 0 : index
    %42 = vector.load %arg3[%c0_12, %c0_13] : memref<128x128xbf16, #tpu.memory_space<vmem>>, vector<128x128xbf16>
    %cst_14 = arith.constant dense<0.000000e+00> : vector<8x128xf32>
    %43 = tpu.matmul %41, %42, %cst_14 {dimension_numbers = #tpu.dot_dimension_numbers<[1], [0], [0], [1], [0, 0, 1, 1], [], []>} : vector<8x128xbf16>, vector<128x128xbf16>, vector<8x128xf32> -> vector<8x128xf32>
    %c0_15 = arith.constant 0 : index
    %c0_16 = arith.constant 0 : index
    %44 = vector.load %arg4[%c0_15, %c0_16] : memref<1x128xf32, #tpu.memory_space<vmem>>, vector<1x128xf32>
    %45 = vector.broadcast %44 : vector<1x128xf32> to vector<8x128xf32>
    %46 = arith.addf %43, %45 : vector<8x128xf32>
    %c0_17 = arith.constant 0 : index
    %c0_18 = arith.constant 0 : index
    %47 = vector.load %arg5[%c0_17, %c0_18] : memref<8x128xf32, #tpu.memory_space<vmem>>, vector<8x128xf32>
    tpu.vector_store %arg5[%c0_17, %c0_18], %46 {strides = array<i32>} : memref<8x128xf32, #tpu.memory_space<vmem>>, vector<8x128xf32>,
    return
  }
}

</mosaic_0001>

<llo_original>
// kernel: eq.5
$region0: #{eq.5}
  %s0 = inlined_call_operand.vmem [shape: s32[8,8], index: 0, kind: input, shape index: {}]
  %s1 = inlined_call_operand.vmem [shape: s32[64], index: 1, kind: output, shape index: {}]
  $region1: #{eq.5} parent=0
    #allocation0 [shape = 'u8[4096]{0}', space=vmem, size = 0x1000, scoped, tag = 'scoped mem for output reshape']
    %v2 = vld [vmem:[%s0] sm:$0x1]
    %vm3 = vcmask 64512
    %4 = vst.msk [vmem:[#allocation0] sm:$0x1] %vm3, %v2
    %s5 = scalar_lea.vmem %s0, 7
    %v6 = vld [vmem:[%s5] sm:$0x1]
    %7 = vrot.lane.b32.xlu0 %v6, 56
    %v8 = vpop.permute.xlu0 %7
    %vm9 = vcmask 523712
    %10 = vst.msk [vmem:[#allocation0] sm:$0x1] %vm9, %v8
    %s11 = scalar_lea.vmem %s0, 6
    %v12 = vld [vmem:[%s11] sm:$0x1]
    %13 = vrot.lane.b32.xlu0 %v12, 48
    %v14 = vpop.permute.xlu0 %13
    %vm15 = vcmask 458112
    %16 = vst.msk [vmem:[#allocation0] sm:$0x1] %vm15, %v14
    %s17 = scalar_lea.vmem %s0, 5
    %v18 = vld [vmem:[%s17] sm:$0x1]
    %19 = vrot.lane.b32.xlu0 %v18, 40
    %v20 = vpop.permute.xlu0 %19
    %vm21 = vcmask 392512
    %22 = vst.msk [vmem:[#allocation0] sm:$0x1] %vm21, %v20
    %s23 = scalar_lea.vmem %s0, 4
    %v24 = vld [vmem:[%s23] sm:$0x1]
    %25 = vrot.lane.b32.xlu0 %v24, 32
    %v26 = vpop.permute.xlu0 %25
    %vm27 = vcmask 326912
    %28 = vst.msk [vmem:[#allocation0] sm:$0x1] %vm27, %v26
    %s29 = scalar_lea.vmem %s0, 3
    %v30 = vld [vmem:[%s29] sm:$0x1]
    %31 = vrot.lane.b32.xlu0 %v30, 24
    %v32 = vpop.permute.xlu0 %31
    %vm33 = vcmask 261312
    %34 = vst.msk [vmem:[#allocation0] sm:$0x1] %vm33, %v32
    %s35 = scalar_lea.vmem %s0, 2
    %v36 = vld [vmem:[%s35] sm:$0x1]
    %37 = vrot.lane.b32.xlu0 %v36, 16
    %v38 = vpop.permute.xlu0 %37
    %vm39 = vcmask 195712
    %40 = vst.msk [vmem:[#allocation0] sm:$0x1] %vm39, %v38
    %s41 = scalar_lea.vmem %s0, 1
    %v42 = vld [vmem:[%s41] sm:$0x1]
    %43 = vrot.lane.b32.xlu0 %v42, 8
    %v44 = vpop.permute.xlu0 %43
    %vm45 = vcmask 130112
    %46 = vst.msk [vmem:[#allocation0] sm:$0x1] %vm45, %v44
    %s48 = sshllo.u32 0, 1
    %v50 = vld [vmem:[#allocation0] sm:%s48]
    %s51 = sshllo.u32 0, 1
    %52 = vst [vmem:[%s1] sm:%s51] %v50

// kernel: forward.1
$region0: #{forward.1}
  #allocation0 [shape = 'u32[]', space=smem, size = 0x4, offset = 0x4, fixed_abs, tag = 'smem constant byte address 0x4 - core index']
  #allocation1 [shape = 'u32[144,128]{1,0:T(1,128)}', space=vmem, size = 0x12000, scoped, tag = 'internal scratch']
  %s0 = inlined_call_operand.vmem [shape: bf16[64,128], index: 0, kind: input, shape index: {}]
  %s1 = inlined_call_operand.vmem [shape: bf16[128,128], index: 1, kind: input, shape index: {}]
  %s2 = inlined_call_operand.hbm [shape: bf16[128,128], index: 2, kind: input, shape index: {}]
  %s3 = inlined_call_operand.hbm [shape: bf16[128,128], index: 3, kind: input, shape index: {}]
  %s4 = inlined_call_operand.vmem [shape: f32[1,128], index: 4, kind: input, shape index: {}]
  %s5 = inlined_call_operand.vmem [shape: f32[8,128], index: 5, kind: output, shape index: {}]
  %s6 = sld [smem:[#allocation0]]
  $region38: #{forward.1} parent=0
    _
  %s8 = ssub.s32 1, %s6
  %s9 = scalar_select 0, %s8, %s6
  $region1: #{forward.1} parent=0
    #allocation2 [shape = 'u8[32768]{0}', space=vmem, size = 0x8000, scoped, tag = 'input window, operand 2, single buffered']
    #allocation3 [shape = 's32[1]{0}', space=sflag, size = 0x4, scoped, tag = 'scoped memory for forward.1']
    #allocation4 [shape = 'u8[32768]{0}', space=vmem, size = 0x8000, scoped, tag = 'input window, operand 3, single buffered']
    #allocation5 [shape = 's32[1]{0}', space=sflag, size = 0x4, scoped, tag = 'scoped memory for forward.1']
    %10 = vsyncpa [#allocation3], 0
    %11 = vsyncpa [#allocation5], 0
    // Predicated region
    $region2: #{forward.1} parent=1 // pred_check
      _
    $region3: #{forward.1} parent=1 // pred_check_branch
      %13 = sbr.rel (0) target = $region5
    $region4: #{forward.1} parent=1 // pred_region
      _
    $region5: #{forward.1} parent=1 // pred_fallthru
      _
    // Predicated region
    $region6: #{forward.1} parent=1 // pred_check
      _
    $region7: #{forward.1} parent=1 // pred_check_branch
      %15 = sbr.rel (0) target = $region9
    $region8: #{forward.1} parent=1 // pred_region
      _
    $region9: #{forward.1} parent=1 // pred_fallthru
      _
    // Predicated region
    $region10: #{forward.1} parent=1 // pred_check
      _
    $region11: #{forward.1} parent=1 // pred_check_branch
      %17 = sbr.rel (0) target = $region13
    $region12: #{forward.1} parent=1 // pred_region
      %s19 = ssub.s32 1024, 1024
      %20 = vsyncadd [#allocation3], %s19
      %s21 = sshll.u32 [#allocation2], 4
      %s22 = int_to_ptr.vmem [resolvable:$true] %s21
      %27 = dma.hbm_to_vmem [thread:$0]  %s2, 1024, %s22, [#allocation3], 64, 64, 4
    $region13: #{forward.1} parent=1 // pred_fallthru
      _
    // Predicated region
    $region14: #{forward.1} parent=1 // pred_check
      _
    $region15: #{forward.1} parent=1 // pred_check_branch
      %29 = sbr.rel (0) target = $region17
    $region16: #{forward.1} parent=1 // pred_region
      %s31 = ssub.s32 1024, 1024
      %32 = vsyncadd [#allocation5], %s31
      %s33 = sshll.u32 [#allocation4], 4
      %s34 = int_to_ptr.vmem [resolvable:$true] %s33
      %39 = dma.hbm_to_vmem [thread:$0]  %s3, 1024, %s34, [#allocation5], 64, 64, 4
    $region17: #{forward.1} parent=1 // pred_fallthru
      _
    // Predicated region
    $region18: #{forward.1} parent=1 // pred_check
      _
    $region19: #{forward.1} parent=1 // pred_check_branch
      %41 = sbr.rel (0) target = $region21
    $region20: #{forward.1} parent=1 // pred_region
      _
    $region21: #{forward.1} parent=1 // pred_fallthru
      _
    // Predicated region
    $region22: #{forward.1} parent=1 // pred_check
      _
    $region23: #{forward.1} parent=1 // pred_check_branch
      %43 = sbr.rel (0) target = $region25
    $region24: #{forward.1} parent=1 // pred_region
      %44 = dma.done [#allocation3], 1024
    $region25: #{forward.1} parent=1 // pred_fallthru
      _
    // Predicated region
    $region26: #{forward.1} parent=1 // pred_check
      _
    $region27: #{forward.1} parent=1 // pred_check_branch
      %46 = sbr.rel (0) target = $region29
    $region28: #{forward.1} parent=1 // pred_region
      %47 = dma.done [#allocation5], 1024
    $region29: #{forward.1} parent=1 // pred_fallthru
      _
    %v49 = vld [vmem:[%s0] sm:$0xf]
    %v50 = vld [vmem:[%s0 + $0x4] sm:$0xf]
    %v51 = vld [vmem:[%s0 + $0x8] sm:$0xf]
    %v52 = vld [vmem:[%s0 + $0xc] sm:$0xf]
    %v53 = vld [vmem:[%s0 + $0x10] sm:$0xf]
    %v54 = vld [vmem:[%s0 + $0x14] sm:$0xf]
    %v55 = vld [vmem:[%s0 + $0x18] sm:$0xf]
    %v56 = vld [vmem:[%s0 + $0x1c] sm:$0xf]
    %v57 = vld [vmem:[%s1] sm:$0xf]
    %v58 = vld [vmem:[%s1 + $0x4] sm:$0xf]
    %v59 = vld [vmem:[%s1 + $0x8] sm:$0xf]
    %v60 = vld [vmem:[%s1 + $0xc] sm:$0xf]
    %v61 = vld [vmem:[%s1 + $0x10] sm:$0xf]
    %v62 = vld [vmem:[%s1 + $0x14] sm:$0xf]
    %v63 = vld [vmem:[%s1 + $0x18] sm:$0xf]
    %v64 = vld [vmem:[%s1 + $0x1c] sm:$0xf]
    %v65 = vld [vmem:[%s1 + $0x20] sm:$0xf]
    %v66 = vld [vmem:[%s1 + $0x24] sm:$0xf]
    %v67 = vld [vmem:[%s1 + $0x28] sm:$0xf]
    %v68 = vld [vmem:[%s1 + $0x2c] sm:$0xf]
    %v69 = vld [vmem:[%s1 + $0x30] sm:$0xf]
    %v70 = vld [vmem:[%s1 + $0x34] sm:$0xf]
    %v71 = vld [vmem:[%s1 + $0x38] sm:$0xf]
    %v72 = vld [vmem:[%s1 + $0x3c] sm:$0xf]
    %v81 = vunpack.c.l.b16 %v49
    %v82 = vunpack.c.l.b16 %v50
    %v83 = vunpack.c.l.b16 %v51
    %v84 = vunpack.c.l.b16 %v52
    %v85 = vunpack.c.l.b16 %v53
    %v86 = vunpack.c.l.b16 %v54
    %v87 = vunpack.c.l.b16 %v55
    %v88 = vunpack.c.l.b16 %v56
    %v89 = vpack.c.b16 %v82, %v81
    %v90 = vpack.c.b16 %v84, %v83
    %v91 = vpack.c.b16 %v86, %v85
    %v92 = vpack.c.b16 %v88, %v87
    %v113 = vunpack.c.l.b16 %v57
    %v114 = vunpack.c.l.b16 %v58
    %v115 = vunpack.c.l.b16 %v59
    %v116 = vunpack.c.l.b16 %v60
    %v117 = vunpack.c.l.b16 %v61
    %v118 = vunpack.c.l.b16 %v62
    %v119 = vunpack.c.l.b16 %v63
    %v120 = vunpack.c.l.b16 %v64
    %v121 = vunpack.c.l.b16 %v65
    %v122 = vunpack.c.l.b16 %v66
    %v123 = vunpack.c.l.b16 %v67
    %v124 = vunpack.c.l.b16 %v68
    %v125 = vunpack.c.l.b16 %v69
    %v126 = vunpack.c.l.b16 %v70
    %v127 = vunpack.c.l.b16 %v71
    %v128 = vunpack.c.l.b16 %v72
    %v129 = vpack.c.b16 %v114, %v113
    %v130 = vpack.c.b16 %v116, %v115
    %v131 = vpack.c.b16 %v118, %v117
    %v132 = vpack.c.b16 %v120, %v119
    %v133 = vpack.c.b16 %v122, %v121
    %v134 = vpack.c.b16 %v124, %v123
    %v135 = vpack.c.b16 %v126, %v125
    %v136 = vpack.c.b16 %v128, %v127
    %145 = vmatprep.subr.bf16.mxu0 0
    %146 = vmatpush1.bf16.msra.mxu0 %v129
    %147 = vmatprep.subr.bf16.mxu0 0
    %148 = vmatpush1.bf16.msra.mxu0 %v130
    %149 = vmatprep.subr.bf16.mxu0 0
    %150 = vmatpush1.bf16.msra.mxu0 %v131
    %151 = vmatprep.subr.bf16.mxu0 0
    %152 = vmatpush1.bf16.msra.mxu0 %v132
    %153 = vmatprep.subr.bf16.mxu0 0
    %154 = vmatpush1.bf16.msra.mxu0 %v133
    %155 = vmatprep.subr.bf16.mxu0 0
    %156 = vmatpush1.bf16.msra.mxu0 %v134
    %157 = vmatprep.subr.bf16.mxu0 0
    %158 = vmatpush1.bf16.msra.mxu0 %v135
    %159 = vmatprep.subr.bf16.mxu0 0
    %160 = vmatpush1.bf16.msra.mxu0 %v136
    %161 = vmatprep.subr.bf16.mxu0 0
    %162 = vmatpush1.bf16.msra.mxu0 0
    %163 = vmatprep.subr.bf16.mxu0 0
    %164 = vmatpush1.bf16.msra.mxu0 0
    %165 = vmatprep.subr.bf16.mxu0 0
    %166 = vmatpush1.bf16.msra.mxu0 0
    %167 = vmatprep.subr.bf16.mxu0 0
    %168 = vmatpush1.bf16.msra.mxu0 0
    %169 = vmatprep.subr.bf16.mxu0 0
    %170 = vmatpush1.bf16.msra.mxu0 0
    %171 = vmatprep.subr.bf16.mxu0 0
    %172 = vmatpush1.bf16.msra.mxu0 0
    %173 = vmatprep.subr.bf16.mxu0 0
    %174 = vmatpush1.bf16.msra.mxu0 0
    %175 = vmatprep.subr.bf16.mxu0 0
    %176 = vmatpush1.bf16.msra.mxu0 0
    %177 = vmatprep.mubr.bf16.mxu0 0
    %178 = vmatmul.mubr.bf16.gmra.mrb[0].mxu0 %v89
    %v179 = vpop.f32.mrb[0].mxu0
    %v180 = vadd.f32 0.0, %v179
    %v181 = vpop.f32.mrb[0].mxu0
    %v182 = vpop.f32.mrb[0].mxu0
    %v183 = vadd.f32 0.0, %v182
    %v184 = vpop.f32.mrb[0].mxu0
    %185 = vmatprep.mubr.bf16.mxu0 0
    %186 = vmatmul.mubr.bf16.gmra.mrb[0].mxu0 %v90
    %v187 = vpop.f32.mrb[0].mxu0
    %v188 = vadd.f32 0.0, %v187
    %v189 = vpop.f32.mrb[0].mxu0
    %v190 = vpop.f32.mrb[0].mxu0
    %v191 = vadd.f32 0.0, %v190
    %v192 = vpop.f32.mrb[0].mxu0
    %193 = vmatprep.mubr.bf16.mxu0 0
    %194 = vmatmul.mubr.bf16.gmra.mrb[0].mxu0 %v91
    %v195 = vpop.f32.mrb[0].mxu0
    %v196 = vadd.f32 0.0, %v195
    %v197 = vpop.f32.mrb[0].mxu0
    %v198 = vpop.f32.mrb[0].mxu0
    %v199 = vadd.f32 0.0, %v198
    %v200 = vpop.f32.mrb[0].mxu0
    %201 = vmatprep.mubr.bf16.mxu0 0
    %202 = vmatmul.mubr.bf16.gmra.mrb[0].mxu0 %v92
    %v203 = vpop.f32.mrb[0].mxu0
    %v204 = vadd.f32 0.0, %v203
    %v205 = vpop.f32.mrb[0].mxu0
    %v206 = vpop.f32.mrb[0].mxu0
    %v207 = vadd.f32 0.0, %v206
    %v208 = vpop.f32.mrb[0].mxu0
    %209 = vdwg.mxu0
    %v210 = vpack.c.bf16 %v183, %v180
    %v211 = vpack.c.bf16 %v191, %v188
    %v212 = vpack.c.bf16 %v199, %v196
    %v213 = vpack.c.bf16 %v207, %v204
    %v214 = vld [vmem:[#allocation2] sm:$0xf]
    %v215 = vld [vmem:[#allocation2 + $0x4] sm:$0xf]
    %v216 = vld [vmem:[#allocation2 + $0x8] sm:$0xf]
    %v217 = vld [vmem:[#allocation2 + $0xc] sm:$0xf]
    %v218 = vld [vmem:[#allocation2 + $0x10] sm:$0xf]
    %v219 = vld [vmem:[#allocation2 + $0x14] sm:$0xf]
    %v220 = vld [vmem:[#allocation2 + $0x18] sm:$0xf]
    %v221 = vld [vmem:[#allocation2 + $0x1c] sm:$0xf]
    %v222 = vld [vmem:[#allocation2 + $0x20] sm:$0xf]
    %v223 = vld [vmem:[#allocation2 + $0x24] sm:$0xf]
    %v224 = vld [vmem:[#allocation2 + $0x28] sm:$0xf]
    %v225 = vld [vmem:[#allocation2 + $0x2c] sm:$0xf]
    %v226 = vld [vmem:[#allocation2 + $0x30] sm:$0xf]
    %v227 = vld [vmem:[#allocation2 + $0x34] sm:$0xf]
    %v228 = vld [vmem:[#allocation2 + $0x38] sm:$0xf]
    %v229 = vld [vmem:[#allocation2 + $0x3c] sm:$0xf]
    %v230 = vtanh.bf16.pop %v210
    %v247 = vunpack.c.l.b16 %v214
    %v248 = vunpack.c.l.b16 %v215
    %v249 = vunpack.c.l.b16 %v216
    %v250 = vunpack.c.l.b16 %v217
    %v251 = vunpack.c.l.b16 %v218
    %v252 = vunpack.c.l.b16 %v219
    %v253 = vunpack.c.l.b16 %v220
    %v254 = vunpack.c.l.b16 %v221
    %v255 = vunpack.c.l.b16 %v222
    %v256 = vunpack.c.l.b16 %v223
    %v257 = vunpack.c.l.b16 %v224
    %v258 = vunpack.c.l.b16 %v225
    %v259 = vunpack.c.l.b16 %v226
    %v260 = vunpack.c.l.b16 %v227
    %v261 = vunpack.c.l.b16 %v228
    %v262 = vunpack.c.l.b16 %v229
    %v263 = vpack.c.b16 %v248, %v247
    %v264 = vpack.c.b16 %v250, %v249
    %v265 = vpack.c.b16 %v252, %v251
    %v266 = vpack.c.b16 %v254, %v253
    %v267 = vpack.c.b16 %v256, %v255
    %v268 = vpack.c.b16 %v258, %v257
    %v269 = vpack.c.b16 %v260, %v259
    %v270 = vpack.c.b16 %v262, %v261
    %279 = vmatprep.subr.bf16.mxu0 0
    %280 = vmatpush1.bf16.msra.mxu0 %v263
    %281 = vmatprep.subr.bf16.mxu0 0
    %282 = vmatpush1.bf16.msra.mxu0 %v264
    %283 = vmatprep.subr.bf16.mxu0 0
    %284 = vmatpush1.bf16.msra.mxu0 %v265
    %285 = vmatprep.subr.bf16.mxu0 0
    %286 = vmatpush1.bf16.msra.mxu0 %v266
    %287 = vmatprep.subr.bf16.mxu0 0
    %288 = vmatpush1.bf16.msra.mxu0 %v267
    %289 = vmatprep.subr.bf16.mxu0 0
    %290 = vmatpush1.bf16.msra.mxu0 %v268
    %291 = vmatprep.subr.bf16.mxu0 0
    %292 = vmatpush1.bf16.msra.mxu0 %v269
    %293 = vmatprep.subr.bf16.mxu0 0
    %294 = vmatpush1.bf16.msra.mxu0 %v270
    %295 = vmatprep.subr.bf16.mxu0 0
    %296 = vmatpush1.bf16.msra.mxu0 0
    %297 = vmatprep.subr.bf16.mxu0 0
    %298 = vmatpush1.bf16.msra.mxu0 0
    %299 = vmatprep.subr.bf16.mxu0 0
    %300 = vmatpush1.bf16.msra.mxu0 0
    %301 = vmatprep.subr.bf16.mxu0 0
    %302 = vmatpush1.bf16.msra.mxu0 0
    %303 = vmatprep.subr.bf16.mxu0 0
    %304 = vmatpush1.bf16.msra.mxu0 0
    %305 = vmatprep.subr.bf16.mxu0 0
    %306 = vmatpush1.bf16.msra.mxu0 0
    %307 = vmatprep.subr.bf16.mxu0 0
    %308 = vmatpush1.bf16.msra.mxu0 0
    %309 = vmatprep.subr.bf16.mxu0 0
    %310 = vmatpush1.bf16.msra.mxu0 0
    %311 = vmatprep.mubr.bf16.mxu0 0
    %312 = vmatmul.mubr.bf16.gmra.mrb[0].mxu0 %v230
    %v313 = vpop.f32.mrb[0].mxu0
    %v314 = vadd.f32 0.0, %v313
    %v315 = vpop.f32.mrb[0].mxu0
    %v316 = vpop.f32.mrb[0].mxu0
    %v317 = vpop.f32.mrb[0].mxu0
    %318 = vdwg.mxu0
    %v319 = vpack.c.bf16 %v314, %v314
    %v321 = vrot.slane %v319, 4
    %v323 = vadd.bf16 %v210, %v321
    %v324 = vtanh.bf16.pop %v323
    %v326 = vrot.slane %v324, 4
    %328 = vmatprep.subr.bf16.mxu0 0
    %329 = vmatpush1.bf16.msra.mxu0 %v263
    %330 = vmatprep.subr.bf16.mxu0 0
    %331 = vmatpush1.bf16.msra.mxu0 %v264
    %332 = vmatprep.subr.bf16.mxu0 0
    %333 = vmatpush1.bf16.msra.mxu0 %v265
    %334 = vmatprep.subr.bf16.mxu0 0
    %335 = vmatpush1.bf16.msra.mxu0 %v266
    %336 = vmatprep.subr.bf16.mxu0 0
    %337 = vmatpush1.bf16.msra.mxu0 %v267
    %338 = vmatprep.subr.bf16.mxu0 0
    %339 = vmatpush1.bf16.msra.mxu0 %v268
    %340 = vmatprep.subr.bf16.mxu0 0
    %341 = vmatpush1.bf16.msra.mxu0 %v269
    %342 = vmatprep.subr.bf16.mxu0 0
    %343 = vmatpush1.bf16.msra.mxu0 %v270
    %344 = vmatprep.subr.bf16.mxu0 0
    %345 = vmatpush1.bf16.msra.mxu0 0
    %346 = vmatprep.subr.bf16.mxu0 0
    %347 = vmatpush1.bf16.msra.mxu0 0
    %348 = vmatprep.subr.bf16.mxu0 0
    %349 = vmatpush1.bf16.msra.mxu0 0
    %350 = vmatprep.subr.bf16.mxu0 0
    %351 = vmatpush1.bf16.msra.mxu0 0
    %352 = vmatprep.subr.bf16.mxu0 0
    %353 = vmatpush1.bf16.msra.mxu0 0
    %354 = vmatprep.subr.bf16.mxu0 0
    %355 = vmatpush1.bf16.msra.mxu0 0
    %356 = vmatprep.subr.bf16.mxu0 0
    %357 = vmatpush1.bf16.msra.mxu0 0
    %358 = vmatprep.subr.bf16.mxu0 0
    %359 = vmatpush1.bf16.msra.mxu0 0
    %360 = vmatprep.mubr.bf16.mxu0 0
    %361 = vmatmul.mubr.bf16.gmra.mrb[0].mxu0 %v326
    %v362 = vpop.f32.mrb[0].mxu0
    %v363 = vadd.f32 0.0, %v362
    %v364 = vpop.f32.mrb[0].mxu0
    %v365 = vpop.f32.mrb[0].mxu0
    %v366 = vpop.f32.mrb[0].mxu0
    %367 = vdwg.mxu0
    %v368 = vpack.c.bf16 %v363, %v363
    %v369 = vadd.bf16 %v211, %v368
    %v370 = vtanh.bf16.pop %v369
    %371 = vmatprep.subr.bf16.mxu0 0
    %372 = vmatpush1.bf16.msra.mxu0 %v263
    %373 = vmatprep.subr.bf16.mxu0 0
    %374 = vmatpush1.bf16.msra.mxu0 %v264
    %375 = vmatprep.subr.bf16.mxu0 0
    %376 = vmatpush1.bf16.msra.mxu0 %v265
    %377 = vmatprep.subr.bf16.mxu0 0
    %378 = vmatpush1.bf16.msra.mxu0 %v266
    %379 = vmatprep.subr.bf16.mxu0 0
    %380 = vmatpush1.bf16.msra.mxu0 %v267
    %381 = vmatprep.subr.bf16.mxu0 0
    %382 = vmatpush1.bf16.msra.mxu0 %v268
    %383 = vmatprep.subr.bf16.mxu0 0
    %384 = vmatpush1.bf16.msra.mxu0 %v269
    %385 = vmatprep.subr.bf16.mxu0 0
    %386 = vmatpush1.bf16.msra.mxu0 %v270
    %387 = vmatprep.subr.bf16.mxu0 0
    %388 = vmatpush1.bf16.msra.mxu0 0
    %389 = vmatprep.subr.bf16.mxu0 0
    %390 = vmatpush1.bf16.msra.mxu0 0
    %391 = vmatprep.subr.bf16.mxu0 0
    %392 = vmatpush1.bf16.msra.mxu0 0
    %393 = vmatprep.subr.bf16.mxu0 0
    %394 = vmatpush1.bf16.msra.mxu0 0
    %395 = vmatprep.subr.bf16.mxu0 0
    %396 = vmatpush1.bf16.msra.mxu0 0
    %397 = vmatprep.subr.bf16.mxu0 0
    %398 = vmatpush1.bf16.msra.mxu0 0
    %399 = vmatprep.subr.bf16.mxu0 0
    %400 = vmatpush1.bf16.msra.mxu0 0
    %401 = vmatprep.subr.bf16.mxu0 0
    %402 = vmatpush1.bf16.msra.mxu0 0
    %403 = vmatprep.mubr.bf16.mxu0 0
    %404 = vmatmul.mubr.bf16.gmra.mrb[0].mxu0 %v370
    %v405 = vpop.f32.mrb[0].mxu0
    %v406 = vadd.f32 0.0, %v405
    %v407 = vpop.f32.mrb[0].mxu0
    %v408 = vpop.f32.mrb[0].mxu0
    %v409 = vpop.f32.mrb[0].mxu0
    %410 = vdwg.mxu0
    %v411 = vpack.c.bf16 %v406, %v406
    %v413 = vrot.slane %v411, 4
    %v415 = vadd.bf16 %v211, %v413
    %v416 = vtanh.bf16.pop %v415
    %v418 = vrot.slane %v416, 4
    %420 = vmatprep.subr.bf16.mxu0 0
    %421 = vmatpush1.bf16.msra.mxu0 %v263
    %422 = vmatprep.subr.bf16.mxu0 0
    %423 = vmatpush1.bf16.msra.mxu0 %v264
    %424 = vmatprep.subr.bf16.mxu0 0
    %425 = vmatpush1.bf16.msra.mxu0 %v265
    %426 = vmatprep.subr.bf16.mxu0 0
    %427 = vmatpush1.bf16.msra.mxu0 %v266
    %428 = vmatprep.subr.bf16.mxu0 0
    %429 = vmatpush1.bf16.msra.mxu0 %v267
    %430 = vmatprep.subr.bf16.mxu0 0
    %431 = vmatpush1.bf16.msra.mxu0 %v268
    %432 = vmatprep.subr.bf16.mxu0 0
    %433 = vmatpush1.bf16.msra.mxu0 %v269
    %434 = vmatprep.subr.bf16.mxu0 0
    %435 = vmatpush1.bf16.msra.mxu0 %v270
    %436 = vmatprep.subr.bf16.mxu0 0
    %437 = vmatpush1.bf16.msra.mxu0 0
    %438 = vmatprep.subr.bf16.mxu0 0
    %439 = vmatpush1.bf16.msra.mxu0 0
    %440 = vmatprep.subr.bf16.mxu0 0
    %441 = vmatpush1.bf16.msra.mxu0 0
    %442 = vmatprep.subr.bf16.mxu0 0
    %443 = vmatpush1.bf16.msra.mxu0 0
    %444 = vmatprep.subr.bf16.mxu0 0
    %445 = vmatpush1.bf16.msra.mxu0 0
    %446 = vmatprep.subr.bf16.mxu0 0
    %447 = vmatpush1.bf16.msra.mxu0 0
    %448 = vmatprep.subr.bf16.mxu0 0
    %449 = vmatpush1.bf16.msra.mxu0 0
    %450 = vmatprep.subr.bf16.mxu0 0
    %451 = vmatpush1.bf16.msra.mxu0 0
    %452 = vmatprep.mubr.bf16.mxu0 0
    %453 = vmatmul.mubr.bf16.gmra.mrb[0].mxu0 %v418
    %v454 = vpop.f32.mrb[0].mxu0
    %v455 = vadd.f32 0.0, %v454
    %v456 = vpop.f32.mrb[0].mxu0
    %v457 = vpop.f32.mrb[0].mxu0
    %v458 = vpop.f32.mrb[0].mxu0
    %459 = vdwg.mxu0
    %v460 = vpack.c.bf16 %v455, %v455
    %v461 = vadd.bf16 %v212, %v460
    %v462 = vtanh.bf16.pop %v461
    %463 = vmatprep.subr.bf16.mxu0 0
    %464 = vmatpush1.bf16.msra.mxu0 %v263
    %465 = vmatprep.subr.bf16.mxu0 0
    %466 = vmatpush1.bf16.msra.mxu0 %v264
    %467 = vmatprep.subr.bf16.mxu0 0
    %468 = vmatpush1.bf16.msra.mxu0 %v265
    %469 = vmatprep.subr.bf16.mxu0 0
    %470 = vmatpush1.bf16.msra.mxu0 %v266
    %471 = vmatprep.subr.bf16.mxu0 0
    %472 = vmatpush1.bf16.msra.mxu0 %v267
    %473 = vmatprep.subr.bf16.mxu0 0
    %474 = vmatpush1.bf16.msra.mxu0 %v268
    %475 = vmatprep.subr.bf16.mxu0 0
    %476 = vmatpush1.bf16.msra.mxu0 %v269
    %477 = vmatprep.subr.bf16.mxu0 0
    %478 = vmatpush1.bf16.msra.mxu0 %v270
    %479 = vmatprep.subr.bf16.mxu0 0
    %480 = vmatpush1.bf16.msra.mxu0 0
    %481 = vmatprep.subr.bf16.mxu0 0
    %482 = vmatpush1.bf16.msra.mxu0 0
    %483 = vmatprep.subr.bf16.mxu0 0
    %484 = vmatpush1.bf16.msra.mxu0 0
    %485 = vmatprep.subr.bf16.mxu0 0
    %486 = vmatpush1.bf16.msra.mxu0 0
    %487 = vmatprep.subr.bf16.mxu0 0
    %488 = vmatpush1.bf16.msra.mxu0 0
    %489 = vmatprep.subr.bf16.mxu0 0
    %490 = vmatpush1.bf16.msra.mxu0 0
    %491 = vmatprep.subr.bf16.mxu0 0
    %492 = vmatpush1.bf16.msra.mxu0 0
    %493 = vmatprep.subr.bf16.mxu0 0
    %494 = vmatpush1.bf16.msra.mxu0 0
    %495 = vmatprep.mubr.bf16.mxu0 0
    %496 = vmatmul.mubr.bf16.gmra.mrb[0].mxu0 %v462
    %v497 = vpop.f32.mrb[0].mxu0
    %v498 = vadd.f32 0.0, %v497
    %v499 = vpop.f32.mrb[0].mxu0
    %v500 = vpop.f32.mrb[0].mxu0
    %v501 = vpop.f32.mrb[0].mxu0
    %502 = vdwg.mxu0
    %v503 = vpack.c.bf16 %v498, %v498
    %v505 = vrot.slane %v503, 4
    %v507 = vadd.bf16 %v212, %v505
    %v508 = vtanh.bf16.pop %v507
    %v510 = vrot.slane %v508, 4
    %512 = vmatprep.subr.bf16.mxu0 0
    %513 = vmatpush1.bf16.msra.mxu0 %v263
    %514 = vmatprep.subr.bf16.mxu0 0
    %515 = vmatpush1.bf16.msra.mxu0 %v264
    %516 = vmatprep.subr.bf16.mxu0 0
    %517 = vmatpush1.bf16.msra.mxu0 %v265
    %518 = vmatprep.subr.bf16.mxu0 0
    %519 = vmatpush1.bf16.msra.mxu0 %v266
    %520 = vmatprep.subr.bf16.mxu0 0
    %521 = vmatpush1.bf16.msra.mxu0 %v267
    %522 = vmatprep.subr.bf16.mxu0 0
    %523 = vmatpush1.bf16.msra.mxu0 %v268
    %524 = vmatprep.subr.bf16.mxu0 0
    %525 = vmatpush1.bf16.msra.mxu0 %v269
    %526 = vmatprep.subr.bf16.mxu0 0
    %527 = vmatpush1.bf16.msra.mxu0 %v270
    %528 = vmatprep.subr.bf16.mxu0 0
    %529 = vmatpush1.bf16.msra.mxu0 0
    %530 = vmatprep.subr.bf16.mxu0 0
    %531 = vmatpush1.bf16.msra.mxu0 0
    %532 = vmatprep.subr.bf16.mxu0 0
    %533 = vmatpush1.bf16.msra.mxu0 0
    %534 = vmatprep.subr.bf16.mxu0 0
    %535 = vmatpush1.bf16.msra.mxu0 0
    %536 = vmatprep.subr.bf16.mxu0 0
    %537 = vmatpush1.bf16.msra.mxu0 0
    %538 = vmatprep.subr.bf16.mxu0 0
    %539 = vmatpush1.bf16.msra.mxu0 0
    %540 = vmatprep.subr.bf16.mxu0 0
    %541 = vmatpush1.bf16.msra.mxu0 0
    %542 = vmatprep.subr.bf16.mxu0 0
    %543 = vmatpush1.bf16.msra.mxu0 0
    %544 = vmatprep.mubr.bf16.mxu0 0
    %545 = vmatmul.mubr.bf16.gmra.mrb[0].mxu0 %v510
    %v546 = vpop.f32.mrb[0].mxu0
    %v547 = vadd.f32 0.0, %v546
    %v548 = vpop.f32.mrb[0].mxu0
    %v549 = vpop.f32.mrb[0].mxu0
    %v550 = vpop.f32.mrb[0].mxu0
    %551 = vdwg.mxu0
    %v552 = vpack.c.bf16 %v547, %v547
    %v553 = vadd.bf16 %v213, %v552
    %v554 = vtanh.bf16.pop %v553
    %555 = vmatprep.subr.bf16.mxu0 0
    %556 = vmatpush1.bf16.msra.mxu0 %v263
    %557 = vmatprep.subr.bf16.mxu0 0
    %558 = vmatpush1.bf16.msra.mxu0 %v264
    %559 = vmatprep.subr.bf16.mxu0 0
    %560 = vmatpush1.bf16.msra.mxu0 %v265
    %561 = vmatprep.subr.bf16.mxu0 0
    %562 = vmatpush1.bf16.msra.mxu0 %v266
    %563 = vmatprep.subr.bf16.mxu0 0
    %564 = vmatpush1.bf16.msra.mxu0 %v267
    %565 = vmatprep.subr.bf16.mxu0 0
    %566 = vmatpush1.bf16.msra.mxu0 %v268
    %567 = vmatprep.subr.bf16.mxu0 0
    %568 = vmatpush1.bf16.msra.mxu0 %v269
    %569 = vmatprep.subr.bf16.mxu0 0
    %570 = vmatpush1.bf16.msra.mxu0 %v270
    %571 = vmatprep.subr.bf16.mxu0 0
    %572 = vmatpush1.bf16.msra.mxu0 0
    %573 = vmatprep.subr.bf16.mxu0 0
    %574 = vmatpush1.bf16.msra.mxu0 0
    %575 = vmatprep.subr.bf16.mxu0 0
    %576 = vmatpush1.bf16.msra.mxu0 0
    %577 = vmatprep.subr.bf16.mxu0 0
    %578 = vmatpush1.bf16.msra.mxu0 0
    %579 = vmatprep.subr.bf16.mxu0 0
    %580 = vmatpush1.bf16.msra.mxu0 0
    %581 = vmatprep.subr.bf16.mxu0 0
    %582 = vmatpush1.bf16.msra.mxu0 0
    %583 = vmatprep.subr.bf16.mxu0 0
    %584 = vmatpush1.bf16.msra.mxu0 0
    %585 = vmatprep.subr.bf16.mxu0 0
    %586 = vmatpush1.bf16.msra.mxu0 0
    %587 = vmatprep.mubr.bf16.mxu0 0
    %588 = vmatmul.mubr.bf16.gmra.mrb[0].mxu0 %v554
    %v589 = vpop.f32.mrb[0].mxu0
    %v590 = vadd.f32 0.0, %v589
    %v591 = vpop.f32.mrb[0].mxu0
    %v592 = vpop.f32.mrb[0].mxu0
    %v593 = vpop.f32.mrb[0].mxu0
    %594 = vdwg.mxu0
    %v595 = vpack.c.bf16 %v590, %v590
    %v597 = vrot.slane %v595, 4
    %v599 = vadd.bf16 %v213, %v597
    %v600 = vtanh.bf16.pop %v599
    %v601 = vld [vmem:[#allocation4] sm:$0xf]
    %v602 = vld [vmem:[#allocation4 + $0x4] sm:$0xf]
    %v603 = vld [vmem:[#allocation4 + $0x8] sm:$0xf]
    %v604 = vld [vmem:[#allocation4 + $0xc] sm:$0xf]
    %v605 = vld [vmem:[#allocation4 + $0x10] sm:$0xf]
    %v606 = vld [vmem:[#allocation4 + $0x14] sm:$0xf]
    %v607 = vld [vmem:[#allocation4 + $0x18] sm:$0xf]
    %v608 = vld [vmem:[#allocation4 + $0x1c] sm:$0xf]
    %v609 = vld [vmem:[#allocation4 + $0x20] sm:$0xf]
    %v610 = vld [vmem:[#allocation4 + $0x24] sm:$0xf]
    %v611 = vld [vmem:[#allocation4 + $0x28] sm:$0xf]
    %v612 = vld [vmem:[#allocation4 + $0x2c] sm:$0xf]
    %v613 = vld [vmem:[#allocation4 + $0x30] sm:$0xf]
    %v614 = vld [vmem:[#allocation4 + $0x34] sm:$0xf]
    %v615 = vld [vmem:[#allocation4 + $0x38] sm:$0xf]
    %v616 = vld [vmem:[#allocation4 + $0x3c] sm:$0xf]
    %v617 = vld [vmem:[%s4] sm:$0x1]
    %v619 = vlaneseq
    %v620 = vshrl.u32 %v619, 7
    %v621 = vsub.s32 0, %v620
    %v622 = vrot.slane %v617, %v621
    %v625 = vrot.slane %v600, 4
    %v643 = vunpack.c.l.b16 %v601
    %v644 = vunpack.c.l.b16 %v602
    %v645 = vunpack.c.l.b16 %v603
    %v646 = vunpack.c.l.b16 %v604
    %v647 = vunpack.c.l.b16 %v605
    %v648 = vunpack.c.l.b16 %v606
    %v649 = vunpack.c.l.b16 %v607
    %v650 = vunpack.c.l.b16 %v608
    %v651 = vunpack.c.l.b16 %v609
    %v652 = vunpack.c.l.b16 %v610
    %v653 = vunpack.c.l.b16 %v611
    %v654 = vunpack.c.l.b16 %v612
    %v655 = vunpack.c.l.b16 %v613
    %v656 = vunpack.c.l.b16 %v614
    %v657 = vunpack.c.l.b16 %v615
    %v658 = vunpack.c.l.b16 %v616
    %v659 = vpack.c.b16 %v644, %v643
    %v660 = vpack.c.b16 %v646, %v645
    %v661 = vpack.c.b16 %v648, %v647
    %v662 = vpack.c.b16 %v650, %v649
    %v663 = vpack.c.b16 %v652, %v651
    %v664 = vpack.c.b16 %v654, %v653
    %v665 = vpack.c.b16 %v656, %v655
    %v666 = vpack.c.b16 %v658, %v657
    %675 = vmatprep.subr.bf16.mxu0 0
    %676 = vmatpush1.bf16.msra.mxu0 %v659
    %677 = vmatprep.subr.bf16.mxu0 0
    %678 = vmatpush1.bf16.msra.mxu0 %v660
    %679 = vmatprep.subr.bf16.mxu0 0
    %680 = vmatpush1.bf16.msra.mxu0 %v661
    %681 = vmatprep.subr.bf16.mxu0 0
    %682 = vmatpush1.bf16.msra.mxu0 %v662
    %683 = vmatprep.subr.bf16.mxu0 0
    %684 = vmatpush1.bf16.msra.mxu0 %v663
    %685 = vmatprep.subr.bf16.mxu0 0
    %686 = vmatpush1.bf16.msra.mxu0 %v664
    %687 = vmatprep.subr.bf16.mxu0 0
    %688 = vmatpush1.bf16.msra.mxu0 %v665
    %689 = vmatprep.subr.bf16.mxu0 0
    %690 = vmatpush1.bf16.msra.mxu0 %v666
    %691 = vmatprep.subr.bf16.mxu0 0
    %692 = vmatpush1.bf16.msra.mxu0 0
    %693 = vmatprep.subr.bf16.mxu0 0
    %694 = vmatpush1.bf16.msra.mxu0 0
    %695 = vmatprep.subr.bf16.mxu0 0
    %696 = vmatpush1.bf16.msra.mxu0 0
    %697 = vmatprep.subr.bf16.mxu0 0
    %698 = vmatpush1.bf16.msra.mxu0 0
    %699 = vmatprep.subr.bf16.mxu0 0
    %700 = vmatpush1.bf16.msra.mxu0 0
    %701 = vmatprep.subr.bf16.mxu0 0
    %702 = vmatpush1.bf16.msra.mxu0 0
    %703 = vmatprep.subr.bf16.mxu0 0
    %704 = vmatpush1.bf16.msra.mxu0 0
    %705 = vmatprep.subr.bf16.mxu0 0
    %706 = vmatpush1.bf16.msra.mxu0 0
    %707 = vmatprep.mubr.bf16.mxu0 0
    %708 = vmatmul.mubr.bf16.gmra.mrb[0].mxu0 %v625
    %v709 = vpop.f32.mrb[0].mxu0
    %v710 = vadd.f32 %v622, %v709
    %v711 = vpop.f32.mrb[0].mxu0
    %v712 = vpop.f32.mrb[0].mxu0
    %v713 = vpop.f32.mrb[0].mxu0
    %714 = vdwg.mxu0
    %715 = vst [vmem:[%s5] sm:$0xff] %v710
    // Predicated region
    $region30: #{forward.1} parent=1 // pred_check
      _
    $region31: #{forward.1} parent=1 // pred_check_branch
      %717 = sbr.rel (0) target = $region33
    $region32: #{forward.1} parent=1 // pred_region
      _
    $region33: #{forward.1} parent=1 // pred_fallthru
      _
    // Predicated region
    $region34: #{forward.1} parent=1 // pred_check
      _
    $region35: #{forward.1} parent=1 // pred_check_branch
      %719 = sbr.rel (0) target = $region37
    $region36: #{forward.1} parent=1 // pred_region
      _
    $region37: #{forward.1} parent=1 // pred_fallthru
      _
    %720 = vsyncpa [#allocation3], 1
    %721 = vsyncpa [#allocation5], 1

</llo_original>
